<compile_context>
chip_gen: v7x
topology: tpu7x:2x2x1
jax: 0.10.0
libtpu: 0.0.40
codegen_flags: <defaults>
</compile_context>

<pallas_src>
import jax
import jax.numpy as jnp
import numpy as np
from jax.experimental import pallas as pl
from jax.experimental.pallas import tpu as pltpu

# ----- synthetic "cfg" -----
N, C_IN, H, W = 2, 4, 16, 16
C_OUT = 32
K = 3
PAD = 1
NUM_CLASSES = 10
HW = H * W
XCOLS = W * C_IN            # 64   per-row width (W padding folded into weights)
KCOLS = K * XCOLS           # 192  fused conv contraction depth
FCOLS = W * C_OUT           # 512  lane-dense conv-output width
C_PAD = 128                 # lane-padded classifier width
M_ROWS = N * H              # 32   batch stacked along MXU rows


def prepare_params(conv_w, conv_b, fc_w, fc_b):
    """One-time weight preprocessing (outside the per-forward hot path).

    conv_w: (K, K, C_IN, C_OUT)  HWIO
    Returns:
      w_toep  : (KCOLS, FCOLS) bf16  block-Toeplitz conv weights (W-padding folded in)
      bias_row: (1, FCOLS)     f32   conv bias tiled over the w axis
      pool_mat: (N, N*H)       bf16  per-image row-sum selector
      m_head  : (FCOLS, C_PAD) bf16  fc_w tiled over w, scaled by 1/(H*W), lane-padded
      b_head  : (1, C_PAD)     f32   fc bias, lane-padded
    """
    # Scatter pattern with W-direction SAME padding folded in:
    #   P[kw, c, j, w] = 1  iff  j == (w + kw - PAD) * C_IN + c  and  0 <= w + kw - PAD < W
    P = np.zeros((K, C_IN, XCOLS, W), np.float32)
    for kw in range(K):
        for w in range(W):
            wp = w + kw - PAD
            if 0 <= wp < W:
                for c in range(C_IN):
                    P[kw, c, wp * C_IN + c, w] = 1.0
    # T[kh, j, w, d] = sum_{kw,c} P[kw,c,j,w] * conv_w[kh,kw,c,d]
    w_toep = jnp.einsum("kcjw,hkcd->hjwd", jnp.asarray(P), conv_w)        # (K, XCOLS, W, C_OUT)
    w_toep = w_toep.reshape(KCOLS, FCOLS).astype(jnp.bfloat16)            # (192, 512)

    bias_row = jnp.tile(conv_b.reshape(1, C_OUT), (1, W)).astype(jnp.float32)   # (1, 512)

    # Per-image pooling selector: pool_mat[n, n*H + h] = 1
    pool = np.zeros((N, M_ROWS), np.float32)
    for n in range(N):
        pool[n, n * H:(n + 1) * H] = 1.0
    pool_mat = jnp.asarray(pool).astype(jnp.bfloat16)                     # (2, 32)

    m_head = jnp.tile(fc_w, (W, 1)) / float(HW)                           # (512, NUM_CLASSES)
    m_head = jnp.pad(m_head, ((0, 0), (0, C_PAD - NUM_CLASSES)))          # (512, 128)
    m_head = m_head.astype(jnp.bfloat16)
    b_head = jnp.pad(fc_b.reshape(1, NUM_CLASSES),
                     ((0, 0), (0, C_PAD - NUM_CLASSES))).astype(jnp.float32)    # (1, 128)
    return w_toep, bias_row, pool_mat, m_head, b_head


def fused_model_kernel(xs_ref, wt_ref, brow_ref, pool_ref, m_ref, b2_ref, o_ref):
    # backbone: 3x3 SAME conv as ONE fused Toeplitz matmul, both images stacked (M=32).
    acc = jnp.dot(xs_ref[...], wt_ref[...],
                  preferred_element_type=jnp.float32)                     # (32, 512) f32
    feat = jnp.maximum(acc + brow_ref[...], 0.0)                          # bias + ReLU (lane-dense)

    # mid (GAP): per-image sum over the H rows via a tiny selector matmul (M=N).
    pooled = jnp.dot(pool_ref[...], feat.astype(jnp.bfloat16),
                     preferred_element_type=jnp.float32)                  # (N, 512) f32

    # head: w-axis pooling, 1/(H*W) scale and fc_w are folded into m_ref.
    logits = jnp.dot(pooled.astype(jnp.bfloat16), m_ref[...],
                     preferred_element_type=jnp.float32) + b2_ref[...]    # (N, 128)

    o_ref[...] = logits                                                   # lane-dense store


@jax.jit
def model_forward(x_nchw, w_toep, bias_row, pool_mat, m_head, b_head):
    # Wrapper: NCHW -> NHWC, zero-pad H only, build the three H-shifted views
    # concatenated along lanes (so no misaligned slices inside the kernel).
    x = jnp.transpose(x_nchw, (0, 2, 3, 1))                               # (N, H, W, C_IN)
    x = x.reshape(N, H, XCOLS)                                            # (N, 16, 64)
    xh = jnp.pad(x, ((0, 0), (PAD, PAD), (0, 0)))                         # (N, 18, 64)
    xs = jnp.concatenate([xh[:, kh:kh + H, :] for kh in range(K)], axis=-1)   # (N, 16, 192)
    xs = xs.reshape(M_ROWS, KCOLS).astype(jnp.bfloat16)                   # (32, 192)

    vmem = pl.BlockSpec(memory_space=pltpu.MemorySpace.VMEM)
    out = pl.pallas_call(
        fused_model_kernel,
        out_shape=jax.ShapeDtypeStruct((N, C_PAD), jnp.float32),
        in_specs=[vmem] * 6,
        out_specs=vmem,
    )(xs, w_toep, bias_row, pool_mat, m_head, b_head)

    return out[:, :NUM_CLASSES]                                           # (N, NUM_CLASSES)


def reference_forward(x_nchw, conv_w, conv_b, fc_w, fc_b):
    # pure-JAX f32 reference for correctness
    x = jnp.transpose(x_nchw, (0, 2, 3, 1))
    y = jax.lax.conv_general_dilated(
        x, conv_w, window_strides=(1, 1), padding="SAME",
        dimension_numbers=("NHWC", "HWIO", "NHWC"))
    y = jnp.maximum(y + conv_b, 0.0)
    pooled = jnp.mean(y, axis=(1, 2))
    return pooled @ fc_w + fc_b


if __name__ == "__main__":
    key = jax.random.PRNGKey(0)
    k_x, k_w1, k_b1, k_w2, k_b2 = jax.random.split(key, 5)

    x = jax.random.normal(k_x, (N, C_IN, H, W), dtype=jnp.float32)
    conv_w = 0.1 * jax.random.normal(k_w1, (K, K, C_IN, C_OUT), dtype=jnp.float32)
    conv_b = 0.1 * jax.random.normal(k_b1, (C_OUT,), dtype=jnp.float32)
    fc_w = 0.1 * jax.random.normal(k_w2, (C_OUT, NUM_CLASSES), dtype=jnp.float32)
    fc_b = 0.1 * jax.random.normal(k_b2, (NUM_CLASSES,), dtype=jnp.float32)

    params = prepare_params(conv_w, conv_b, fc_w, fc_b)
    out = jax.block_until_ready(model_forward(x, *params))

    ref = jax.block_until_ready(reference_forward(x, conv_w, conv_b, fc_w, fc_b))
    # bf16 matmul operands (f32 accumulation) -> relaxed tolerance vs f32 reference.
    np.testing.assert_allclose(np.asarray(out), np.asarray(ref), rtol=2e-2, atol=2e-2)

    print("KERNEL_OK")
</pallas_src>

<mosaic_0001>
module attributes {stable_mosaic.version = 11 : i64} {
  func.func @fused_model_kernel(%arg0: memref<32x192xbf16, #tpu.memory_space<vmem>>, %arg1: memref<192x512xbf16, #tpu.memory_space<vmem>>, %arg2: memref<1x512xf32, #tpu.memory_space<vmem>>, %arg3: memref<2x32xbf16, #tpu.memory_space<vmem>>, %arg4: memref<512x128xbf16, #tpu.memory_space<vmem>>, %arg5: memref<1x128xf32, #tpu.memory_space<vmem>>, %arg6: memref<2x128xf32, #tpu.memory_space<vmem>>) attributes {dimension_semantics = [], scalar_prefetch = 0 : i64, scratch_operands = 0 : i64, tpu.core_type = #tpu.core_type<tc>} {
    %c0 = arith.constant 0 : index
    %c0_0 = arith.constant 0 : index
    %0 = vector.load %arg0[%c0, %c0_0] : memref<32x192xbf16, #tpu.memory_space<vmem>>, vector<32x192xbf16>
    %c0_1 = arith.constant 0 : index
    %c0_2 = arith.constant 0 : index
    %1 = vector.load %arg1[%c0_1, %c0_2] : memref<192x512xbf16, #tpu.memory_space<vmem>>, vector<192x512xbf16>
    %cst = arith.constant dense<0.000000e+00> : vector<32x512xf32>
    %2 = tpu.matmul %0, %1, %cst {dimension_numbers = #tpu.dot_dimension_numbers<[1], [0], [0], [1], [0, 0, 1, 1], [], []>} : vector<32x192xbf16>, vector<192x512xbf16>, vector<32x512xf32> -> vector<32x512xf32>
    %c0_3 = arith.constant 0 : index
    %c0_4 = arith.constant 0 : index
    %3 = vector.load %arg2[%c0_3, %c0_4] : memref<1x512xf32, #tpu.memory_space<vmem>>, vector<1x512xf32>
    %4 = vector.broadcast %3 : vector<1x512xf32> to vector<32x512xf32>
    %5 = arith.addf %2, %4 : vector<32x512xf32>
    %cst_5 = arith.constant 0.000000e+00 : f32
    %6 = vector.broadcast %cst_5 : f32 to vector<32x512xf32>
    %7 = arith.maximumf %5, %6 : vector<32x512xf32>
    %c0_6 = arith.constant 0 : index
    %c0_7 = arith.constant 0 : index
    %8 = vector.load %arg3[%c0_6, %c0_7] : memref<2x32xbf16, #tpu.memory_space<vmem>>, vector<2x32xbf16>
    %9 = arith.truncf %7 : vector<32x512xf32> to vector<32x512xbf16>
    %cst_8 = arith.constant dense<0.000000e+00> : vector<2x512xf32>
    %10 = tpu.matmul %8, %9, %cst_8 {dimension_numbers = #tpu.dot_dimension_numbers<[1], [0], [0], [1], [0, 0, 1, 1], [], []>} : vector<2x32xbf16>, vector<32x512xbf16>, vector<2x512xf32> -> vector<2x512xf32>
    %11 = arith.truncf %10 : vector<2x512xf32> to vector<2x512xbf16>
    %c0_9 = arith.constant 0 : index
    %c0_10 = arith.constant 0 : index
    %12 = vector.load %arg4[%c0_9, %c0_10] : memref<512x128xbf16, #tpu.memory_space<vmem>>, vector<512x128xbf16>
    %cst_11 = arith.constant dense<0.000000e+00> : vector<2x128xf32>
    %13 = tpu.matmul %11, %12, %cst_11 {dimension_numbers = #tpu.dot_dimension_numbers<[1], [0], [0], [1], [0, 0, 1, 1], [], []>} : vector<2x512xbf16>, vector<512x128xbf16>, vector<2x128xf32> -> vector<2x128xf32>
    %c0_12 = arith.constant 0 : index
    %c0_13 = arith.constant 0 : index
    %14 = vector.load %arg5[%c0_12, %c0_13] : memref<1x128xf32, #tpu.memory_space<vmem>>, vector<1x128xf32>
    %15 = vector.broadcast %14 : vector<1x128xf32> to vector<2x128xf32>
    %16 = arith.addf %13, %15 : vector<2x128xf32>
    %c0_14 = arith.constant 0 : index
    %c0_15 = arith.constant 0 : index
    %17 = vector.load %arg6[%c0_14, %c0_15] : memref<2x128xf32, #tpu.memory_space<vmem>>, vector<2x128xf32>
    tpu.vector_store %arg6[%c0_14, %c0_15], %16 {strides = array<i32>} : memref<2x128xf32, #tpu.memory_space<vmem>>, vector<2x128xf32>,
    return
  }
}

</mosaic_0001>

<llo_original>
// kernel: model_forward.1
$region0: #{model_forward.1}
  #allocation0 [shape = 'u32[]', space=smem, size = 0x4, offset = 0x4, fixed_abs, tag = 'smem constant byte address 0x4 - core index']
  #allocation1 [shape = 'u32[144,128]{1,0:T(1,128)}', space=vmem, size = 0x12000, scoped, tag = 'internal scratch']
  %s0 = inlined_call_operand.vmem [shape: bf16[32,192], index: 0, kind: input, shape index: {}]
  %s1 = inlined_call_operand.vmem [shape: bf16[192,512], index: 1, kind: input, shape index: {}]
  %s2 = inlined_call_operand.vmem [shape: f32[1,512], index: 2, kind: input, shape index: {}]
  %s3 = inlined_call_operand.vmem [shape: bf16[2,32], index: 3, kind: input, shape index: {}]
  %s4 = inlined_call_operand.vmem [shape: bf16[512,128], index: 4, kind: input, shape index: {}]
  %s5 = inlined_call_operand.vmem [shape: f32[1,128], index: 5, kind: input, shape index: {}]
  %s6 = inlined_call_operand.hbm [shape: f32[2,128], index: 6, kind: output, shape index: {}]
  %s7 = sld [smem:[#allocation0]]
  $region34: #{model_forward.1} parent=0
    _
  %s9 = ssub.s32 1, %s7
  %s10 = scalar_select 0, %s9, %s7
  $region1: #{model_forward.1} parent=0
    #allocation2 [shape = 'u8[1024]{0}', space=vmem, size = 0x400, scoped, tag = 'output window, operand 0, single buffered']
    #allocation3 [shape = 's32[1]{0}', space=sflag, size = 0x4, scoped, tag = 'scoped memory for model_forward.1']
    %11 = vsyncpa [#allocation3], 0
    // Predicated region
    $region2: #{model_forward.1} parent=1 // pred_check
      _
    $region3: #{model_forward.1} parent=1 // pred_check_branch
      %13 = sbr.rel (0) target = $region5
    $region4: #{model_forward.1} parent=1 // pred_region
      _
    $region5: #{model_forward.1} parent=1 // pred_fallthru
      _
    // Predicated region
    $region6: #{model_forward.1} parent=1 // pred_check
      _
    $region7: #{model_forward.1} parent=1 // pred_check_branch
      %15 = sbr.rel (0) target = $region9
    $region8: #{model_forward.1} parent=1 // pred_region
      _
    $region9: #{model_forward.1} parent=1 // pred_fallthru
      _
    // Predicated region
    $region10: #{model_forward.1} parent=1 // pred_check
      _
    $region11: #{model_forward.1} parent=1 // pred_check_branch
      %17 = sbr.rel (0) target = $region13
    $region12: #{model_forward.1} parent=1 // pred_region
      _
    $region13: #{model_forward.1} parent=1 // pred_fallthru
      _
    // Predicated region
    $region14: #{model_forward.1} parent=1 // pred_check
      _
    $region15: #{model_forward.1} parent=1 // pred_check_branch
      %19 = sbr.rel (0) target = $region17
    $region16: #{model_forward.1} parent=1 // pred_region
      _
    $region17: #{model_forward.1} parent=1 // pred_fallthru
      _
    // Predicated region
    $region18: #{model_forward.1} parent=1 // pred_check
      _
    $region19: #{model_forward.1} parent=1 // pred_check_branch
      %21 = sbr.rel (0) target = $region21
    $region20: #{model_forward.1} parent=1 // pred_region
      _
    $region21: #{model_forward.1} parent=1 // pred_fallthru
      _
    // Predicated region
    $region22: #{model_forward.1} parent=1 // pred_check
      _
    $region23: #{model_forward.1} parent=1 // pred_check_branch
      %23 = sbr.rel (0) target = $region25
    $region24: #{model_forward.1} parent=1 // pred_region
      _
    $region25: #{model_forward.1} parent=1 // pred_fallthru
      _
    %v25 = vld [vmem:[%s0] sm:$0xff]
    %v26 = vld [vmem:[%s0 + $0x8] sm:$0xff]
    %v27 = vld [vmem:[%s0 + $0x10] sm:$0xff]
    %v28 = vld [vmem:[%s0 + $0x18] sm:$0xff]
    %v29 = vld [vmem:[%s1] sm:$0xff]
    %v30 = vld [vmem:[%s1 + $0x8] sm:$0xff]
    %v31 = vld [vmem:[%s1 + $0x10] sm:$0xff]
    %v32 = vld [vmem:[%s1 + $0x18] sm:$0xff]
    %v33 = vld [vmem:[%s1 + $0x20] sm:$0xff]
    %v34 = vld [vmem:[%s1 + $0x28] sm:$0xff]
    %v35 = vld [vmem:[%s1 + $0x30] sm:$0xff]
    %v36 = vld [vmem:[%s1 + $0x38] sm:$0xff]
    %v37 = vld [vmem:[%s1 + $0x40] sm:$0xff]
    %v38 = vld [vmem:[%s1 + $0x48] sm:$0xff]
    %v39 = vld [vmem:[%s1 + $0x50] sm:$0xff]
    %v40 = vld [vmem:[%s1 + $0x58] sm:$0xff]
    %v41 = vld [vmem:[%s1 + $0x60] sm:$0xff]
    %v42 = vld [vmem:[%s1 + $0x68] sm:$0xff]
    %v43 = vld [vmem:[%s1 + $0x70] sm:$0xff]
    %v44 = vld [vmem:[%s1 + $0x78] sm:$0xff]
    %v45 = vld [vmem:[%s1 + $0x80] sm:$0xff]
    %v46 = vld [vmem:[%s1 + $0x88] sm:$0xff]
    %v47 = vld [vmem:[%s1 + $0x90] sm:$0xff]
    %v48 = vld [vmem:[%s1 + $0x98] sm:$0xff]
    %v49 = vld [vmem:[%s1 + $0xa0] sm:$0xff]
    %v50 = vld [vmem:[%s1 + $0xa8] sm:$0xff]
    %v51 = vld [vmem:[%s1 + $0xb0] sm:$0xff]
    %v52 = vld [vmem:[%s1 + $0xb8] sm:$0xff]
    %v53 = vld [vmem:[%s1 + $0xc0] sm:$0xff]
    %v54 = vld [vmem:[%s1 + $0xc8] sm:$0xff]
    %v55 = vld [vmem:[%s1 + $0xd0] sm:$0xff]
    %v56 = vld [vmem:[%s1 + $0xd8] sm:$0xff]
    %v57 = vld [vmem:[%s1 + $0xe0] sm:$0xff]
    %v58 = vld [vmem:[%s1 + $0xe8] sm:$0xff]
    %v59 = vld [vmem:[%s1 + $0xf0] sm:$0xff]
    %v60 = vld [vmem:[%s1 + $0xf8] sm:$0xff]
    %v61 = vld [vmem:[%s1 + $0x100] sm:$0xff]
    %v62 = vld [vmem:[%s1 + $0x108] sm:$0xff]
    %v63 = vld [vmem:[%s1 + $0x110] sm:$0xff]
    %v64 = vld [vmem:[%s1 + $0x118] sm:$0xff]
    %v65 = vld [vmem:[%s1 + $0x120] sm:$0xff]
    %v66 = vld [vmem:[%s1 + $0x128] sm:$0xff]
    %v67 = vld [vmem:[%s1 + $0x130] sm:$0xff]
    %v68 = vld [vmem:[%s1 + $0x138] sm:$0xff]
    %v69 = vld [vmem:[%s1 + $0x140] sm:$0xff]
    %v70 = vld [vmem:[%s1 + $0x148] sm:$0xff]
    %v71 = vld [vmem:[%s1 + $0x150] sm:$0xff]
    %v72 = vld [vmem:[%s1 + $0x158] sm:$0xff]
    %v73 = vld [vmem:[%s1 + $0x160] sm:$0xff]
    %v74 = vld [vmem:[%s1 + $0x168] sm:$0xff]
    %v75 = vld [vmem:[%s1 + $0x170] sm:$0xff]
    %v76 = vld [vmem:[%s1 + $0x178] sm:$0xff]
    %v77 = vld [vmem:[%s2] sm:$0xf]
    %v79 = vlaneseq
    %v80 = vshrl.u32 %v79, 7
    %v81 = vsub.s32 0, %v80
    %v82 = vrot.slane %v77, %v81
    %v83 = vlaneseq
    %v84 = vshrl.u32 %v83, 7
    %v85 = vsub.s32 1, %v84
    %v86 = vrot.slane %v77, %v85
    %v87 = vlaneseq
    %v88 = vshrl.u32 %v87, 7
    %v89 = vsub.s32 2, %v88
    %v90 = vrot.slane %v77, %v89
    %v91 = vlaneseq
    %v92 = vshrl.u32 %v91, 7
    %v93 = vsub.s32 3, %v92
    %v94 = vrot.slane %v77, %v93
    %v103 = vunpack.c.l.b16 %v25
    %v104 = vunpack.c.h.b16 %v25
    %v105 = vunpack.c.l.b16 %v26
    %v106 = vunpack.c.h.b16 %v26
    %v107 = vunpack.c.l.b16 %v27
    %v108 = vunpack.c.h.b16 %v27
    %v109 = vunpack.c.l.b16 %v28
    %v110 = vunpack.c.h.b16 %v28
    %v111 = vpack.c.b16 %v105, %v103
    %v112 = vpack.c.b16 %v106, %v104
    %v113 = vpack.c.b16 %v109, %v107
    %v114 = vpack.c.b16 %v110, %v108
    %v165 = vunpack.c.l.b16 %v29
    %v166 = vunpack.c.h.b16 %v29
    %v167 = vunpack.c.l.b16 %v30
    %v168 = vunpack.c.h.b16 %v30
    %v169 = vunpack.c.l.b16 %v31
    %v170 = vunpack.c.h.b16 %v31
    %v171 = vunpack.c.l.b16 %v32
    %v172 = vunpack.c.h.b16 %v32
    %v173 = vunpack.c.l.b16 %v33
    %v174 = vunpack.c.h.b16 %v33
    %v175 = vunpack.c.l.b16 %v34
    %v176 = vunpack.c.h.b16 %v34
    %v177 = vunpack.c.l.b16 %v35
    %v178 = vunpack.c.h.b16 %v35
    %v179 = vunpack.c.l.b16 %v36
    %v180 = vunpack.c.h.b16 %v36
    %v181 = vunpack.c.l.b16 %v37
    %v182 = vunpack.c.h.b16 %v37
    %v183 = vunpack.c.l.b16 %v38
    %v184 = vunpack.c.h.b16 %v38
    %v185 = vunpack.c.l.b16 %v39
    %v186 = vunpack.c.h.b16 %v39
    %v187 = vunpack.c.l.b16 %v40
    %v188 = vunpack.c.h.b16 %v40
    %v189 = vunpack.c.l.b16 %v41
    %v190 = vunpack.c.h.b16 %v41
    %v191 = vunpack.c.l.b16 %v42
    %v192 = vunpack.c.h.b16 %v42
    %v193 = vunpack.c.l.b16 %v43
    %v194 = vunpack.c.h.b16 %v43
    %v195 = vunpack.c.l.b16 %v44
    %v196 = vunpack.c.h.b16 %v44
    %v197 = vunpack.c.l.b16 %v45
    %v198 = vunpack.c.h.b16 %v45
    %v199 = vunpack.c.l.b16 %v46
    %v200 = vunpack.c.h.b16 %v46
    %v201 = vunpack.c.l.b16 %v47
    %v202 = vunpack.c.h.b16 %v47
    %v203 = vunpack.c.l.b16 %v48
    %v204 = vunpack.c.h.b16 %v48
    %v205 = vunpack.c.l.b16 %v49
    %v206 = vunpack.c.h.b16 %v49
    %v207 = vunpack.c.l.b16 %v50
    %v208 = vunpack.c.h.b16 %v50
    %v209 = vunpack.c.l.b16 %v51
    %v210 = vunpack.c.h.b16 %v51
    %v211 = vunpack.c.l.b16 %v52
    %v212 = vunpack.c.h.b16 %v52
    %v213 = vunpack.c.l.b16 %v53
    %v214 = vunpack.c.h.b16 %v53
    %v215 = vunpack.c.l.b16 %v54
    %v216 = vunpack.c.h.b16 %v54
    %v217 = vunpack.c.l.b16 %v55
    %v218 = vunpack.c.h.b16 %v55
    %v219 = vunpack.c.l.b16 %v56
    %v220 = vunpack.c.h.b16 %v56
    %v221 = vunpack.c.l.b16 %v57
    %v222 = vunpack.c.h.b16 %v57
    %v223 = vunpack.c.l.b16 %v58
    %v224 = vunpack.c.h.b16 %v58
    %v225 = vunpack.c.l.b16 %v59
    %v226 = vunpack.c.h.b16 %v59
    %v227 = vunpack.c.l.b16 %v60
    %v228 = vunpack.c.h.b16 %v60
    %v229 = vunpack.c.l.b16 %v61
    %v230 = vunpack.c.h.b16 %v61
    %v231 = vunpack.c.l.b16 %v62
    %v232 = vunpack.c.h.b16 %v62
    %v233 = vunpack.c.l.b16 %v63
    %v234 = vunpack.c.h.b16 %v63
    %v235 = vunpack.c.l.b16 %v64
    %v236 = vunpack.c.h.b16 %v64
    %v237 = vunpack.c.l.b16 %v65
    %v238 = vunpack.c.h.b16 %v65
    %v239 = vunpack.c.l.b16 %v66
    %v240 = vunpack.c.h.b16 %v66
    %v241 = vunpack.c.l.b16 %v67
    %v242 = vunpack.c.h.b16 %v67
    %v243 = vunpack.c.l.b16 %v68
    %v244 = vunpack.c.h.b16 %v68
    %v245 = vunpack.c.l.b16 %v69
    %v246 = vunpack.c.h.b16 %v69
    %v247 = vunpack.c.l.b16 %v70
    %v248 = vunpack.c.h.b16 %v70
    %v249 = vunpack.c.l.b16 %v71
    %v250 = vunpack.c.h.b16 %v71
    %v251 = vunpack.c.l.b16 %v72
    %v252 = vunpack.c.h.b16 %v72
    %v253 = vunpack.c.l.b16 %v73
    %v254 = vunpack.c.h.b16 %v73
    %v255 = vunpack.c.l.b16 %v74
    %v256 = vunpack.c.h.b16 %v74
    %v257 = vunpack.c.l.b16 %v75
    %v258 = vunpack.c.h.b16 %v75
    %v259 = vunpack.c.l.b16 %v76
    %v260 = vunpack.c.h.b16 %v76
    %v261 = vpack.c.b16 %v169, %v165
    %v262 = vpack.c.b16 %v170, %v166
    %v263 = vpack.c.b16 %v171, %v167
    %v264 = vpack.c.b16 %v172, %v168
    %v265 = vpack.c.b16 %v177, %v173
    %v266 = vpack.c.b16 %v178, %v174
    %v267 = vpack.c.b16 %v179, %v175
    %v268 = vpack.c.b16 %v180, %v176
    %v269 = vpack.c.b16 %v185, %v181
    %v270 = vpack.c.b16 %v186, %v182
    %v271 = vpack.c.b16 %v187, %v183
    %v272 = vpack.c.b16 %v188, %v184
    %v273 = vpack.c.b16 %v193, %v189
    %v274 = vpack.c.b16 %v194, %v190
    %v275 = vpack.c.b16 %v195, %v191
    %v276 = vpack.c.b16 %v196, %v192
    %v277 = vpack.c.b16 %v201, %v197
    %v278 = vpack.c.b16 %v202, %v198
    %v279 = vpack.c.b16 %v203, %v199
    %v280 = vpack.c.b16 %v204, %v200
    %v281 = vpack.c.b16 %v209, %v205
    %v282 = vpack.c.b16 %v210, %v206
    %v283 = vpack.c.b16 %v211, %v207
    %v284 = vpack.c.b16 %v212, %v208
    %v285 = vpack.c.b16 %v217, %v213
    %v286 = vpack.c.b16 %v218, %v214
    %v287 = vpack.c.b16 %v219, %v215
    %v288 = vpack.c.b16 %v220, %v216
    %v289 = vpack.c.b16 %v225, %v221
    %v290 = vpack.c.b16 %v226, %v222
    %v291 = vpack.c.b16 %v227, %v223
    %v292 = vpack.c.b16 %v228, %v224
    %v293 = vpack.c.b16 %v233, %v229
    %v294 = vpack.c.b16 %v234, %v230
    %v295 = vpack.c.b16 %v235, %v231
    %v296 = vpack.c.b16 %v236, %v232
    %v297 = vpack.c.b16 %v241, %v237
    %v298 = vpack.c.b16 %v242, %v238
    %v299 = vpack.c.b16 %v243, %v239
    %v300 = vpack.c.b16 %v244, %v240
    %v301 = vpack.c.b16 %v249, %v245
    %v302 = vpack.c.b16 %v250, %v246
    %v303 = vpack.c.b16 %v251, %v247
    %v304 = vpack.c.b16 %v252, %v248
    %v305 = vpack.c.b16 %v257, %v253
    %v306 = vpack.c.b16 %v258, %v254
    %v307 = vpack.c.b16 %v259, %v255
    %v308 = vpack.c.b16 %v260, %v256
    %vm357 = vcmask 523264
    %v359 = vsel %vm357, %v112, 0
    %v362 = vsel %vm357, %v114, 0
    %364 = vmatprep.subr.bf16.mxu0 %v262
    %365 = vmatpush1.bf16.msra.mxu0 %v261
    %366 = vmatprep.subr.bf16.mxu0 %v266
    %367 = vmatpush1.bf16.msra.mxu0 %v265
    %368 = vmatprep.subr.bf16.mxu0 %v270
    %369 = vmatpush1.bf16.msra.mxu0 %v269
    %370 = vmatprep.subr.bf16.mxu0 %v274
    %371 = vmatpush1.bf16.msra.mxu0 %v273
    %372 = vmatprep.subr.bf16.mxu0 %v278
    %373 = vmatpush1.bf16.msra.mxu0 %v277
    %374 = vmatprep.subr.bf16.mxu0 %v282
    %375 = vmatpush1.bf16.msra.mxu0 %v281
    %376 = vmatprep.subr.bf16.mxu0 %v286
    %377 = vmatpush1.bf16.msra.mxu0 %v285
    %378 = vmatprep.subr.bf16.mxu0 %v290
    %379 = vmatpush1.bf16.msra.mxu0 %v289
    %380 = vmatprep.subr.bf16.mxu0 %v294
    %381 = vmatpush1.bf16.msra.mxu0 %v293
    %382 = vmatprep.subr.bf16.mxu0 %v298
    %383 = vmatpush1.bf16.msra.mxu0 %v297
    %384 = vmatprep.subr.bf16.mxu0 %v302
    %385 = vmatpush1.bf16.msra.mxu0 %v301
    %386 = vmatprep.subr.bf16.mxu0 %v306
    %387 = vmatpush1.bf16.msra.mxu0 %v305
    %388 = vmatprep.subr.bf16.mxu0 0
    %389 = vmatpush1.bf16.msra.mxu0 0
    %390 = vmatprep.subr.bf16.mxu0 0
    %391 = vmatpush1.bf16.msra.mxu0 0
    %392 = vmatprep.subr.bf16.mxu0 0
    %393 = vmatpush1.bf16.msra.mxu0 0
    %394 = vmatprep.subr.bf16.mxu0 0
    %395 = vmatpush1.bf16.msra.mxu0 0
    %396 = vmatprep.mubr.bf16.mxu0 %v359
    %397 = vmatmul.mubr.bf16.gmra.mrb[0].mxu0 %v111
    %v398 = vpop.f32.mrb[0].mxu0
    %v399 = vadd.f32 %v82, %v398
    %v400 = vpop.f32.mrb[0].mxu0
    %v401 = vadd.f32 %v86, %v400
    %v402 = vpop.f32.mrb[0].mxu0
    %v403 = vadd.f32 %v82, %v402
    %v404 = vpop.f32.mrb[0].mxu0
    %v405 = vadd.f32 %v86, %v404
    %406 = vmatprep.mubr.bf16.mxu0 %v362
    %407 = vmatmul.mubr.bf16.gmra.mrb[0].mxu0 %v113
    %v408 = vpop.f32.mrb[0].mxu0
    %v409 = vadd.f32 %v82, %v408
    %v410 = vpop.f32.mrb[0].mxu0
    %v411 = vadd.f32 %v86, %v410
    %v412 = vpop.f32.mrb[0].mxu0
    %v413 = vadd.f32 %v82, %v412
    %v414 = vpop.f32.mrb[0].mxu0
    %v415 = vadd.f32 %v86, %v414
    %416 = vdwg.mxu0
    %417 = vmatprep.subr.bf16.mxu0 %v264
    %418 = vmatpush1.bf16.msra.mxu0 %v263
    %419 = vmatprep.subr.bf16.mxu0 %v268
    %420 = vmatpush1.bf16.msra.mxu0 %v267
    %421 = vmatprep.subr.bf16.mxu0 %v272
    %422 = vmatpush1.bf16.msra.mxu0 %v271
    %423 = vmatprep.subr.bf16.mxu0 %v276
    %424 = vmatpush1.bf16.msra.mxu0 %v275
    %425 = vmatprep.subr.bf16.mxu0 %v280
    %426 = vmatpush1.bf16.msra.mxu0 %v279
    %427 = vmatprep.subr.bf16.mxu0 %v284
    %428 = vmatpush1.bf16.msra.mxu0 %v283
    %429 = vmatprep.subr.bf16.mxu0 %v288
    %430 = vmatpush1.bf16.msra.mxu0 %v287
    %431 = vmatprep.subr.bf16.mxu0 %v292
    %432 = vmatpush1.bf16.msra.mxu0 %v291
    %433 = vmatprep.subr.bf16.mxu0 %v296
    %434 = vmatpush1.bf16.msra.mxu0 %v295
    %435 = vmatprep.subr.bf16.mxu0 %v300
    %436 = vmatpush1.bf16.msra.mxu0 %v299
    %437 = vmatprep.subr.bf16.mxu0 %v304
    %438 = vmatpush1.bf16.msra.mxu0 %v303
    %439 = vmatprep.subr.bf16.mxu0 %v308
    %440 = vmatpush1.bf16.msra.mxu0 %v307
    %441 = vmatprep.subr.bf16.mxu0 0
    %442 = vmatpush1.bf16.msra.mxu0 0
    %443 = vmatprep.subr.bf16.mxu0 0
    %444 = vmatpush1.bf16.msra.mxu0 0
    %445 = vmatprep.subr.bf16.mxu0 0
    %446 = vmatpush1.bf16.msra.mxu0 0
    %447 = vmatprep.subr.bf16.mxu0 0
    %448 = vmatpush1.bf16.msra.mxu0 0
    %449 = vmatprep.mubr.bf16.mxu0 %v359
    %450 = vmatmul.mubr.bf16.gmra.mrb[0].mxu0 %v111
    %v451 = vpop.f32.mrb[0].mxu0
    %v452 = vadd.f32 %v90, %v451
    %v453 = vpop.f32.mrb[0].mxu0
    %v454 = vadd.f32 %v94, %v453
    %v455 = vpop.f32.mrb[0].mxu0
    %v456 = vadd.f32 %v90, %v455
    %v457 = vpop.f32.mrb[0].mxu0
    %v458 = vadd.f32 %v94, %v457
    %459 = vmatprep.mubr.bf16.mxu0 %v362
    %460 = vmatmul.mubr.bf16.gmra.mrb[0].mxu0 %v113
    %v461 = vpop.f32.mrb[0].mxu0
    %v462 = vadd.f32 %v90, %v461
    %v463 = vpop.f32.mrb[0].mxu0
    %v464 = vadd.f32 %v94, %v463
    %v465 = vpop.f32.mrb[0].mxu0
    %v466 = vadd.f32 %v90, %v465
    %v467 = vpop.f32.mrb[0].mxu0
    %v468 = vadd.f32 %v94, %v467
    %469 = vdwg.mxu0
    %v470 = vmax.f32 %v399, 0.0
    %v471 = vmax.f32 %v401, 0.0
    %v472 = vmax.f32 %v452, 0.0
    %v473 = vmax.f32 %v454, 0.0
    %v474 = vmax.f32 %v403, 0.0
    %v475 = vmax.f32 %v405, 0.0
    %v476 = vmax.f32 %v456, 0.0
    %v477 = vmax.f32 %v458, 0.0
    %v478 = vmax.f32 %v409, 0.0
    %v479 = vmax.f32 %v411, 0.0
    %v480 = vmax.f32 %v462, 0.0
    %v481 = vmax.f32 %v464, 0.0
    %v482 = vmax.f32 %v413, 0.0
    %v483 = vmax.f32 %v415, 0.0
    %v484 = vmax.f32 %v466, 0.0
    %v485 = vmax.f32 %v468, 0.0
    %v486 = vld [vmem:[%s3] sm:$0x1]
    %v487 = vpack.c.bf16 %v474, %v470
    %v488 = vpack.c.bf16 %v475, %v471
    %v489 = vpack.c.bf16 %v476, %v472
    %v490 = vpack.c.bf16 %v477, %v473
    %v491 = vpack.c.bf16 %v482, %v478
    %v492 = vpack.c.bf16 %v483, %v479
    %v493 = vpack.c.bf16 %v484, %v480
    %v494 = vpack.c.bf16 %v485, %v481
    %vm495 = vcmask 261120
    %v497 = vsel %vm495, %v486, 0
    %499 = vmatprep.subr.bf16.mxu0 %v488
    %500 = vmatpush1.bf16.msra.mxu0 %v487
    %501 = vmatprep.subr.bf16.mxu0 %v492
    %502 = vmatpush1.bf16.msra.mxu0 %v491
    %503 = vmatprep.subr.bf16.mxu0 0
    %504 = vmatpush1.bf16.msra.mxu0 0
    %505 = vmatprep.subr.bf16.mxu0 0
    %506 = vmatpush1.bf16.msra.mxu0 0
    %507 = vmatprep.subr.bf16.mxu0 0
    %508 = vmatpush1.bf16.msra.mxu0 0
    %509 = vmatprep.subr.bf16.mxu0 0
    %510 = vmatpush1.bf16.msra.mxu0 0
    %511 = vmatprep.subr.bf16.mxu0 0
    %512 = vmatpush1.bf16.msra.mxu0 0
    %513 = vmatprep.subr.bf16.mxu0 0
    %514 = vmatpush1.bf16.msra.mxu0 0
    %515 = vmatprep.subr.bf16.mxu0 0
    %516 = vmatpush1.bf16.msra.mxu0 0
    %517 = vmatprep.subr.bf16.mxu0 0
    %518 = vmatpush1.bf16.msra.mxu0 0
    %519 = vmatprep.subr.bf16.mxu0 0
    %520 = vmatpush1.bf16.msra.mxu0 0
    %521 = vmatprep.subr.bf16.mxu0 0
    %522 = vmatpush1.bf16.msra.mxu0 0
    %523 = vmatprep.subr.bf16.mxu0 0
    %524 = vmatpush1.bf16.msra.mxu0 0
    %525 = vmatprep.subr.bf16.mxu0 0
    %526 = vmatpush1.bf16.msra.mxu0 0
    %527 = vmatprep.subr.bf16.mxu0 0
    %528 = vmatpush1.bf16.msra.mxu0 0
    %529 = vmatprep.subr.bf16.mxu0 0
    %530 = vmatpush1.bf16.msra.mxu0 0
    %531 = vmatprep.mubr.bf16.mxu0 0
    %532 = vmatmul.mubr.bf16.gmra.mrb[0].mxu0 %v497
    %v533 = vpop.f32.mrb[0].mxu0
    %v534 = vadd.f32 0.0, %v533
    %v535 = vpop.f32.mrb[0].mxu0
    %v536 = vadd.f32 0.0, %v535
    %v537 = vpop.f32.mrb[0].mxu0
    %v538 = vpop.f32.mrb[0].mxu0
    %539 = vdwg.mxu0
    %540 = vmatprep.subr.bf16.mxu0 %v490
    %541 = vmatpush1.bf16.msra.mxu0 %v489
    %542 = vmatprep.subr.bf16.mxu0 %v494
    %543 = vmatpush1.bf16.msra.mxu0 %v493
    %544 = vmatprep.subr.bf16.mxu0 0
    %545 = vmatpush1.bf16.msra.mxu0 0
    %546 = vmatprep.subr.bf16.mxu0 0
    %547 = vmatpush1.bf16.msra.mxu0 0
    %548 = vmatprep.subr.bf16.mxu0 0
    %549 = vmatpush1.bf16.msra.mxu0 0
    %550 = vmatprep.subr.bf16.mxu0 0
    %551 = vmatpush1.bf16.msra.mxu0 0
    %552 = vmatprep.subr.bf16.mxu0 0
    %553 = vmatpush1.bf16.msra.mxu0 0
    %554 = vmatprep.subr.bf16.mxu0 0
    %555 = vmatpush1.bf16.msra.mxu0 0
    %556 = vmatprep.subr.bf16.mxu0 0
    %557 = vmatpush1.bf16.msra.mxu0 0
    %558 = vmatprep.subr.bf16.mxu0 0
    %559 = vmatpush1.bf16.msra.mxu0 0
    %560 = vmatprep.subr.bf16.mxu0 0
    %561 = vmatpush1.bf16.msra.mxu0 0
    %562 = vmatprep.subr.bf16.mxu0 0
    %563 = vmatpush1.bf16.msra.mxu0 0
    %564 = vmatprep.subr.bf16.mxu0 0
    %565 = vmatpush1.bf16.msra.mxu0 0
    %566 = vmatprep.subr.bf16.mxu0 0
    %567 = vmatpush1.bf16.msra.mxu0 0
    %568 = vmatprep.subr.bf16.mxu0 0
    %569 = vmatpush1.bf16.msra.mxu0 0
    %570 = vmatprep.subr.bf16.mxu0 0
    %571 = vmatpush1.bf16.msra.mxu0 0
    %572 = vmatprep.mubr.bf16.mxu0 0
    %573 = vmatmul.mubr.bf16.gmra.mrb[0].mxu0 %v497
    %v574 = vpop.f32.mrb[0].mxu0
    %v575 = vadd.f32 0.0, %v574
    %v576 = vpop.f32.mrb[0].mxu0
    %v577 = vadd.f32 0.0, %v576
    %v578 = vpop.f32.mrb[0].mxu0
    %v579 = vpop.f32.mrb[0].mxu0
    %580 = vdwg.mxu0
    %v581 = vpack.c.bf16 %v534, %v534
    %v582 = vpack.c.bf16 %v536, %v536
    %v583 = vpack.c.bf16 %v575, %v575
    %v584 = vpack.c.bf16 %v577, %v577
    %v585 = vld [vmem:[%s4] sm:$0xf]
    %v586 = vld [vmem:[%s4 + $0x4] sm:$0xf]
    %v587 = vld [vmem:[%s4 + $0x8] sm:$0xf]
    %v588 = vld [vmem:[%s4 + $0xc] sm:$0xf]
    %v589 = vld [vmem:[%s4 + $0x10] sm:$0xf]
    %v590 = vld [vmem:[%s4 + $0x14] sm:$0xf]
    %v591 = vld [vmem:[%s4 + $0x18] sm:$0xf]
    %v592 = vld [vmem:[%s4 + $0x1c] sm:$0xf]
    %v593 = vld [vmem:[%s4 + $0x20] sm:$0xf]
    %v594 = vld [vmem:[%s4 + $0x24] sm:$0xf]
    %v595 = vld [vmem:[%s4 + $0x28] sm:$0xf]
    %v596 = vld [vmem:[%s4 + $0x2c] sm:$0xf]
    %v597 = vld [vmem:[%s4 + $0x30] sm:$0xf]
    %v598 = vld [vmem:[%s4 + $0x34] sm:$0xf]
    %v599 = vld [vmem:[%s4 + $0x38] sm:$0xf]
    %v600 = vld [vmem:[%s4 + $0x3c] sm:$0xf]
    %v601 = vld [vmem:[%s4 + $0x40] sm:$0xf]
    %v602 = vld [vmem:[%s4 + $0x44] sm:$0xf]
    %v603 = vld [vmem:[%s4 + $0x48] sm:$0xf]
    %v604 = vld [vmem:[%s4 + $0x4c] sm:$0xf]
    %v605 = vld [vmem:[%s4 + $0x50] sm:$0xf]
    %v606 = vld [vmem:[%s4 + $0x54] sm:$0xf]
    %v607 = vld [vmem:[%s4 + $0x58] sm:$0xf]
    %v608 = vld [vmem:[%s4 + $0x5c] sm:$0xf]
    %v609 = vld [vmem:[%s4 + $0x60] sm:$0xf]
    %v610 = vld [vmem:[%s4 + $0x64] sm:$0xf]
    %v611 = vld [vmem:[%s4 + $0x68] sm:$0xf]
    %v612 = vld [vmem:[%s4 + $0x6c] sm:$0xf]
    %v613 = vld [vmem:[%s4 + $0x70] sm:$0xf]
    %v614 = vld [vmem:[%s4 + $0x74] sm:$0xf]
    %v615 = vld [vmem:[%s4 + $0x78] sm:$0xf]
    %v616 = vld [vmem:[%s4 + $0x7c] sm:$0xf]
    %v617 = vld [vmem:[%s4 + $0x80] sm:$0xf]
    %v618 = vld [vmem:[%s4 + $0x84] sm:$0xf]
    %v619 = vld [vmem:[%s4 + $0x88] sm:$0xf]
    %v620 = vld [vmem:[%s4 + $0x8c] sm:$0xf]
    %v621 = vld [vmem:[%s4 + $0x90] sm:$0xf]
    %v622 = vld [vmem:[%s4 + $0x94] sm:$0xf]
    %v623 = vld [vmem:[%s4 + $0x98] sm:$0xf]
    %v624 = vld [vmem:[%s4 + $0x9c] sm:$0xf]
    %v625 = vld [vmem:[%s4 + $0xa0] sm:$0xf]
    %v626 = vld [vmem:[%s4 + $0xa4] sm:$0xf]
    %v627 = vld [vmem:[%s4 + $0xa8] sm:$0xf]
    %v628 = vld [vmem:[%s4 + $0xac] sm:$0xf]
    %v629 = vld [vmem:[%s4 + $0xb0] sm:$0xf]
    %v630 = vld [vmem:[%s4 + $0xb4] sm:$0xf]
    %v631 = vld [vmem:[%s4 + $0xb8] sm:$0xf]
    %v632 = vld [vmem:[%s4 + $0xbc] sm:$0xf]
    %v633 = vld [vmem:[%s4 + $0xc0] sm:$0xf]
    %v634 = vld [vmem:[%s4 + $0xc4] sm:$0xf]
    %v635 = vld [vmem:[%s4 + $0xc8] sm:$0xf]
    %v636 = vld [vmem:[%s4 + $0xcc] sm:$0xf]
    %v637 = vld [vmem:[%s4 + $0xd0] sm:$0xf]
    %v638 = vld [vmem:[%s4 + $0xd4] sm:$0xf]
    %v639 = vld [vmem:[%s4 + $0xd8] sm:$0xf]
    %v640 = vld [vmem:[%s4 + $0xdc] sm:$0xf]
    %v641 = vld [vmem:[%s4 + $0xe0] sm:$0xf]
    %v642 = vld [vmem:[%s4 + $0xe4] sm:$0xf]
    %v643 = vld [vmem:[%s4 + $0xe8] sm:$0xf]
    %v644 = vld [vmem:[%s4 + $0xec] sm:$0xf]
    %v645 = vld [vmem:[%s4 + $0xf0] sm:$0xf]
    %v646 = vld [vmem:[%s4 + $0xf4] sm:$0xf]
    %v647 = vld [vmem:[%s4 + $0xf8] sm:$0xf]
    %v648 = vld [vmem:[%s4 + $0xfc] sm:$0xf]
    %v649 = vld [vmem:[%s5] sm:$0x1]
    %v651 = vlaneseq
    %v652 = vshrl.u32 %v651, 7
    %v653 = vsub.s32 0, %v652
    %v654 = vrot.slane %v649, %v653
    %v720 = vunpack.c.l.b16 %v585
    %v721 = vunpack.c.l.b16 %v586
    %v722 = vunpack.c.l.b16 %v587
    %v723 = vunpack.c.l.b16 %v588
    %v724 = vunpack.c.l.b16 %v589
    %v725 = vunpack.c.l.b16 %v590
    %v726 = vunpack.c.l.b16 %v591
    %v727 = vunpack.c.l.b16 %v592
    %v728 = vunpack.c.l.b16 %v593
    %v729 = vunpack.c.l.b16 %v594
    %v730 = vunpack.c.l.b16 %v595
    %v731 = vunpack.c.l.b16 %v596
    %v732 = vunpack.c.l.b16 %v597
    %v733 = vunpack.c.l.b16 %v598
    %v734 = vunpack.c.l.b16 %v599
    %v735 = vunpack.c.l.b16 %v600
    %v736 = vunpack.c.l.b16 %v601
    %v737 = vunpack.c.l.b16 %v602
    %v738 = vunpack.c.l.b16 %v603
    %v739 = vunpack.c.l.b16 %v604
    %v740 = vunpack.c.l.b16 %v605
    %v741 = vunpack.c.l.b16 %v606
    %v742 = vunpack.c.l.b16 %v607
    %v743 = vunpack.c.l.b16 %v608
    %v744 = vunpack.c.l.b16 %v609
    %v745 = vunpack.c.l.b16 %v610
    %v746 = vunpack.c.l.b16 %v611
    %v747 = vunpack.c.l.b16 %v612
    %v748 = vunpack.c.l.b16 %v613
    %v749 = vunpack.c.l.b16 %v614
    %v750 = vunpack.c.l.b16 %v615
    %v751 = vunpack.c.l.b16 %v616
    %v752 = vunpack.c.l.b16 %v617
    %v753 = vunpack.c.l.b16 %v618
    %v754 = vunpack.c.l.b16 %v619
    %v755 = vunpack.c.l.b16 %v620
    %v756 = vunpack.c.l.b16 %v621
    %v757 = vunpack.c.l.b16 %v622
    %v758 = vunpack.c.l.b16 %v623
    %v759 = vunpack.c.l.b16 %v624
    %v760 = vunpack.c.l.b16 %v625
    %v761 = vunpack.c.l.b16 %v626
    %v762 = vunpack.c.l.b16 %v627
    %v763 = vunpack.c.l.b16 %v628
    %v764 = vunpack.c.l.b16 %v629
    %v765 = vunpack.c.l.b16 %v630
    %v766 = vunpack.c.l.b16 %v631
    %v767 = vunpack.c.l.b16 %v632
    %v768 = vunpack.c.l.b16 %v633
    %v769 = vunpack.c.l.b16 %v634
    %v770 = vunpack.c.l.b16 %v635
    %v771 = vunpack.c.l.b16 %v636
    %v772 = vunpack.c.l.b16 %v637
    %v773 = vunpack.c.l.b16 %v638
    %v774 = vunpack.c.l.b16 %v639
    %v775 = vunpack.c.l.b16 %v640
    %v776 = vunpack.c.l.b16 %v641
    %v777 = vunpack.c.l.b16 %v642
    %v778 = vunpack.c.l.b16 %v643
    %v779 = vunpack.c.l.b16 %v644
    %v780 = vunpack.c.l.b16 %v645
    %v781 = vunpack.c.l.b16 %v646
    %v782 = vunpack.c.l.b16 %v647
    %v783 = vunpack.c.l.b16 %v648
    %v784 = vpack.c.b16 %v721, %v720
    %v785 = vpack.c.b16 %v723, %v722
    %v786 = vpack.c.b16 %v725, %v724
    %v787 = vpack.c.b16 %v727, %v726
    %v788 = vpack.c.b16 %v729, %v728
    %v789 = vpack.c.b16 %v731, %v730
    %v790 = vpack.c.b16 %v733, %v732
    %v791 = vpack.c.b16 %v735, %v734
    %v792 = vpack.c.b16 %v737, %v736
    %v793 = vpack.c.b16 %v739, %v738
    %v794 = vpack.c.b16 %v741, %v740
    %v795 = vpack.c.b16 %v743, %v742
    %v796 = vpack.c.b16 %v745, %v744
    %v797 = vpack.c.b16 %v747, %v746
    %v798 = vpack.c.b16 %v749, %v748
    %v799 = vpack.c.b16 %v751, %v750
    %v800 = vpack.c.b16 %v753, %v752
    %v801 = vpack.c.b16 %v755, %v754
    %v802 = vpack.c.b16 %v757, %v756
    %v803 = vpack.c.b16 %v759, %v758
    %v804 = vpack.c.b16 %v761, %v760
    %v805 = vpack.c.b16 %v763, %v762
    %v806 = vpack.c.b16 %v765, %v764
    %v807 = vpack.c.b16 %v767, %v766
    %v808 = vpack.c.b16 %v769, %v768
    %v809 = vpack.c.b16 %v771, %v770
    %v810 = vpack.c.b16 %v773, %v772
    %v811 = vpack.c.b16 %v775, %v774
    %v812 = vpack.c.b16 %v777, %v776
    %v813 = vpack.c.b16 %v779, %v778
    %v814 = vpack.c.b16 %v781, %v780
    %v815 = vpack.c.b16 %v783, %v782
    %848 = vmatprep.subr.bf16.mxu0 0
    %849 = vmatpush1.bf16.msra.mxu0 %v784
    %850 = vmatprep.subr.bf16.mxu0 0
    %851 = vmatpush1.bf16.msra.mxu0 %v785
    %852 = vmatprep.subr.bf16.mxu0 0
    %853 = vmatpush1.bf16.msra.mxu0 %v786
    %854 = vmatprep.subr.bf16.mxu0 0
    %855 = vmatpush1.bf16.msra.mxu0 %v787
    %856 = vmatprep.subr.bf16.mxu0 0
    %857 = vmatpush1.bf16.msra.mxu0 %v788
    %858 = vmatprep.subr.bf16.mxu0 0
    %859 = vmatpush1.bf16.msra.mxu0 %v789
    %860 = vmatprep.subr.bf16.mxu0 0
    %861 = vmatpush1.bf16.msra.mxu0 %v790
    %862 = vmatprep.subr.bf16.mxu0 0
    %863 = vmatpush1.bf16.msra.mxu0 %v791
    %864 = vmatprep.subr.bf16.mxu0 0
    %865 = vmatpush1.bf16.msra.mxu0 %v792
    %866 = vmatprep.subr.bf16.mxu0 0
    %867 = vmatpush1.bf16.msra.mxu0 %v793
    %868 = vmatprep.subr.bf16.mxu0 0
    %869 = vmatpush1.bf16.msra.mxu0 %v794
    %870 = vmatprep.subr.bf16.mxu0 0
    %871 = vmatpush1.bf16.msra.mxu0 %v795
    %872 = vmatprep.subr.bf16.mxu0 0
    %873 = vmatpush1.bf16.msra.mxu0 %v796
    %874 = vmatprep.subr.bf16.mxu0 0
    %875 = vmatpush1.bf16.msra.mxu0 %v797
    %876 = vmatprep.subr.bf16.mxu0 0
    %877 = vmatpush1.bf16.msra.mxu0 %v798
    %878 = vmatprep.subr.bf16.mxu0 0
    %879 = vmatpush1.bf16.msra.mxu0 %v799
    %880 = vmatprep.mubr.bf16.mxu0 %v582
    %881 = vmatmul.mubr.bf16.gmra.mrb[0].mxu0 %v581
    %v882 = vpop.f32.mrb[0].mxu0
    %v883 = vadd.f32 %v654, %v882
    %v884 = vpop.f32.mrb[0].mxu0
    %v885 = vpop.f32.mrb[0].mxu0
    %v886 = vpop.f32.mrb[0].mxu0
    %887 = vdwg.mxu0
    %888 = vmatprep.subr.bf16.mxu0 0
    %889 = vmatpush1.bf16.msra.mxu0 %v800
    %890 = vmatprep.subr.bf16.mxu0 0
    %891 = vmatpush1.bf16.msra.mxu0 %v801
    %892 = vmatprep.subr.bf16.mxu0 0
    %893 = vmatpush1.bf16.msra.mxu0 %v802
    %894 = vmatprep.subr.bf16.mxu0 0
    %895 = vmatpush1.bf16.msra.mxu0 %v803
    %896 = vmatprep.subr.bf16.mxu0 0
    %897 = vmatpush1.bf16.msra.mxu0 %v804
    %898 = vmatprep.subr.bf16.mxu0 0
    %899 = vmatpush1.bf16.msra.mxu0 %v805
    %900 = vmatprep.subr.bf16.mxu0 0
    %901 = vmatpush1.bf16.msra.mxu0 %v806
    %902 = vmatprep.subr.bf16.mxu0 0
    %903 = vmatpush1.bf16.msra.mxu0 %v807
    %904 = vmatprep.subr.bf16.mxu0 0
    %905 = vmatpush1.bf16.msra.mxu0 %v808
    %906 = vmatprep.subr.bf16.mxu0 0
    %907 = vmatpush1.bf16.msra.mxu0 %v809
    %908 = vmatprep.subr.bf16.mxu0 0
    %909 = vmatpush1.bf16.msra.mxu0 %v810
    %910 = vmatprep.subr.bf16.mxu0 0
    %911 = vmatpush1.bf16.msra.mxu0 %v811
    %912 = vmatprep.subr.bf16.mxu0 0
    %913 = vmatpush1.bf16.msra.mxu0 %v812
    %914 = vmatprep.subr.bf16.mxu0 0
    %915 = vmatpush1.bf16.msra.mxu0 %v813
    %916 = vmatprep.subr.bf16.mxu0 0
    %917 = vmatpush1.bf16.msra.mxu0 %v814
    %918 = vmatprep.subr.bf16.mxu0 0
    %919 = vmatpush1.bf16.msra.mxu0 %v815
    %920 = vmatprep.mubr.bf16.mxu0 %v584
    %921 = vmatmul.mubr.bf16.gmra.mrb[0].mxu0 %v583
    %v922 = vpop.f32.mrb[0].mxu0
    %v923 = vadd.f32 %v883, %v922
    %v924 = vpop.f32.mrb[0].mxu0
    %v925 = vpop.f32.mrb[0].mxu0
    %v926 = vpop.f32.mrb[0].mxu0
    %927 = vdwg.mxu0
    %928 = vst [vmem:[#allocation2] sm:$0x3] %v923
    // Predicated region
    $region26: #{model_forward.1} parent=1 // pred_check
      _
    $region27: #{model_forward.1} parent=1 // pred_check_branch
      %930 = sbr.rel (0) target = $region29
    $region28: #{model_forward.1} parent=1 // pred_region
      %s932 = ssub.s32 32, 32
      %933 = vsyncadd [#allocation3], %s932
      %s935 = sshll.u32 [#allocation2], 4
      %s936 = int_to_ptr.vmem [resolvable:$true] %s935
      %938 = dma.vmem_to_hbm [thread:$0]  %s936, 32, %s6, [#allocation3]
    $region29: #{model_forward.1} parent=1 // pred_fallthru
      _
    // Predicated region
    $region30: #{model_forward.1} parent=1 // pred_check
      _
    $region31: #{model_forward.1} parent=1 // pred_check_branch
      %940 = sbr.rel (0) target = $region33
    $region32: #{model_forward.1} parent=1 // pred_region
      %941 = dma.done [#allocation3], 32
    $region33: #{model_forward.1} parent=1 // pred_fallthru
      _
    %942 = vsyncpa [#allocation3], 1

</llo_original>
